<compile_context>
chip_gen: v5e
topology: v5e:2x2
jax: 0.10.0
libtpu: 0.0.40
codegen_flags: <defaults>
</compile_context>

<pallas_src>
import math

import jax
import jax.numpy as jnp
import numpy as np
from jax.experimental import pallas as pl
from jax.experimental.pallas import tpu as pltpu


def attention_pool_kernel(x_ref, pos0_ref, posr_ref, wq_ref, bq_ref,
                          wkv_ref, bkv_ref, wc_ref, bc_ref,
                          mask_ref, maskt_ref, o_ref):
    B, L, C = x_ref.shape                    # B = batch tile, L = T*H*W tokens
    H = mask_ref.shape[1]                    # num_heads
    head_dim = C // H
    scale = 1.0 / math.sqrt(head_dim)

    x = x_ref[...].astype(jnp.float32)       # (B, L, C); stats kept in f32
    pos0 = pos0_ref[...]                     # (1, C)  pos-emb of the mean token
    posr = posr_ref[...]                     # (L, C)  pos-emb of spatial tokens
    mask = mask_ref[...]                     # (C, H)  one-hot channel->head
    maskt = maskt_ref[...]                   # (H, C)

    # Pooled (mean) token and the L spatial tokens; no concatenate -> the L-row
    # block stays sublane-aligned and the mean token is a cheap 1-row side path.
    mean_tok = jnp.mean(x, axis=1) + pos0                        # (B, C)
    tok_rest = x + posr[None, :, :]                              # (B, L, C)
    tok_rest_flat = tok_rest.reshape(B * L, C)                   # leading-dim merge

    # Q only for the pooled token: only attention row 0 is returned by the module.
    q = (jnp.dot(mean_tok, wq_ref[...], preferred_element_type=jnp.float32)
         + bq_ref[...]) * scale                                  # (B, C)

    # Fused K|V projection (one big matmul over all tokens, one over the mean row).
    wkv = wkv_ref[...]                                           # (C, 2C)
    bkv = bkv_ref[...]                                           # (1, 2C)
    kv_mean = jnp.dot(mean_tok, wkv, preferred_element_type=jnp.float32) + bkv        # (B, 2C)
    kv_rest = jnp.dot(tok_rest_flat, wkv, preferred_element_type=jnp.float32) + bkv   # (B*L, 2C)
    k_mean, v_mean = kv_mean[:, :C], kv_mean[:, C:]              # (B, C) each
    k_rest = kv_rest[:, :C].reshape(B, L, C)                     # (B, L, C)
    v_rest = kv_rest[:, C:].reshape(B, L, C)                     # (B, L, C)

    # Per-head scores via the one-hot head-membership matrix: no per-head loop,
    # no tiny Dh-wide matmuls, no concat.
    s_mean = jnp.dot(q * k_mean, mask, preferred_element_type=jnp.float32)            # (B, H)
    qk_rest = (k_rest * q[:, None, :]).reshape(B * L, C)
    s_rest = jnp.dot(qk_rest, mask,
                     preferred_element_type=jnp.float32).reshape(B, L, H)             # (B, L, H)

    # Softmax over the S = L + 1 key positions, per (batch, head), max-subtracted.
    m = jnp.maximum(s_mean, jnp.max(s_rest, axis=1))             # (B, H)
    p_mean = jnp.exp(s_mean - m)                                 # (B, H)
    p_rest = jnp.exp(s_rest - m[:, None, :])                     # (B, L, H)
    denom = p_mean + jnp.sum(p_rest, axis=1)                     # (B, H)
    inv = pl.reciprocal(denom, approx=True)                      # EUP slot (free-ish)
    p_mean = p_mean * inv
    p_rest = p_rest * inv[:, None, :]

    # Expand head probabilities back to channels and take the weighted value sum.
    pm_full = jnp.dot(p_mean, maskt, preferred_element_type=jnp.float32)              # (B, C)
    pr_full = jnp.dot(p_rest.reshape(B * L, H), maskt,
                      preferred_element_type=jnp.float32).reshape(B, L, C)            # (B, L, C)
    attn = pm_full * v_mean + jnp.sum(pr_full * v_rest, axis=1)                       # (B, C)

    # Output projection of the pooled row only.
    y = jnp.dot(attn, wc_ref[...], preferred_element_type=jnp.float32) + bc_ref[...]  # (B, D_out)
    o_ref[...] = y.astype(o_ref.dtype)


def attention_pool_3d(x_ncthw, params, num_heads):
    N, C, T, H, W = x_ncthw.shape
    L = T * H * W
    D_out = params["wc"].shape[0]
    assert C % num_heads == 0
    head_dim = C // num_heads

    # NCTHW -> (N, L, C) token-major.  Single XLA permute of x; in a full model
    # fuse this into the producer (or consume channel-major) to avoid the pass.
    x = jnp.transpose(x_ncthw.reshape(N, C, L), (0, 2, 1))

    # Batch tiling: several batch elements per grid step to amortize per-step
    # overhead and keep output stores full-width; whole batch in one step when
    # N is small / not 8-divisible.
    if N % 8 == 0:
        B_tile = 8
        while B_tile * 2 <= 64 and N % (B_tile * 2) == 0:
            B_tile *= 2
    else:
        B_tile = N
    grid = (N // B_tile,)

    pos = params["pos"].astype(jnp.float32)                      # (L+1, C)
    pos0 = pos[0:1, :]                                           # (1, C)
    posr = pos[1:, :]                                            # (L, C)
    wq_t = params["wq"].T                                        # (C, C)
    wkv_t = jnp.concatenate([params["wk"].T, params["wv"].T], axis=1)      # (C, 2C)
    bq = params["bq"].reshape(1, C)
    bkv = jnp.concatenate([params["bk"], params["bv"]]).reshape(1, 2 * C)
    wc_t = params["wc"].T                                        # (C, D_out)
    bc = params["bc"].reshape(1, D_out)

    # One-hot channel -> head membership matrix (and its transpose).
    head_of_ch = np.arange(C) // head_dim
    mask_np = (head_of_ch[:, None] == np.arange(num_heads)[None, :]).astype(np.float32)
    mask = jnp.asarray(mask_np)                                  # (C, H)
    maskt = jnp.asarray(mask_np.T)                               # (H, C)

    out = pl.pallas_call(
        attention_pool_kernel,
        out_shape=jax.ShapeDtypeStruct((N, D_out), jnp.float32),
        grid_spec=pltpu.PrefetchScalarGridSpec(
            num_scalar_prefetch=0,
            grid=grid,
            in_specs=[
                pl.BlockSpec((B_tile, L, C), lambda b: (b, 0, 0)),   # x tokens
                pl.BlockSpec((1, C), lambda b: (0, 0)),              # pos[0]
                pl.BlockSpec((L, C), lambda b: (0, 0)),              # pos[1:]
                pl.BlockSpec((C, C), lambda b: (0, 0)),              # Wq^T
                pl.BlockSpec((1, C), lambda b: (0, 0)),              # bq
                pl.BlockSpec((C, 2 * C), lambda b: (0, 0)),          # [Wk^T | Wv^T]
                pl.BlockSpec((1, 2 * C), lambda b: (0, 0)),          # [bk | bv]
                pl.BlockSpec((C, D_out), lambda b: (0, 0)),          # Wc^T
                pl.BlockSpec((1, D_out), lambda b: (0, 0)),          # bc
                pl.BlockSpec((C, num_heads), lambda b: (0, 0)),      # head one-hot
                pl.BlockSpec((num_heads, C), lambda b: (0, 0)),      # transpose
            ],
            out_specs=pl.BlockSpec((B_tile, D_out), lambda b: (b, 0)),
        ),
        compiler_params=pltpu.CompilerParams(
            dimension_semantics=("parallel",),   # batch axis -> both v7x TCs
        ),
    )(x, pos0, posr, wq_t, bq, wkv_t, bkv, wc_t, bc, mask, maskt)
    return out


def attention_pool_3d_reference(x_ncthw, params, num_heads):
    """Pure-JAX replica of the PyTorch forward (for correctness checking)."""
    N, C, T, H, W = x_ncthw.shape
    L = T * H * W
    S = L + 1
    head_dim = C // num_heads
    x = x_ncthw.reshape(N, C, L).transpose(2, 0, 1)                  # (L, N, C)
    x = jnp.concatenate([x.mean(axis=0, keepdims=True), x], axis=0)  # (S, N, C)
    x = x + params["pos"][:, None, :]
    q = x @ params["wq"].T + params["bq"]
    k = x @ params["wk"].T + params["bk"]
    v = x @ params["wv"].T + params["bv"]
    q = q * (head_dim ** -0.5)
    qh = q.reshape(S, N, num_heads, head_dim)
    kh = k.reshape(S, N, num_heads, head_dim)
    vh = v.reshape(S, N, num_heads, head_dim)
    scores = jnp.einsum("qnhd,knhd->nhqk", qh, kh)
    p = jax.nn.softmax(scores, axis=-1)
    o = jnp.einsum("nhqk,knhd->qnhd", p, vh).reshape(S, N, C)
    y = o @ params["wc"].T + params["bc"]
    return y[0]                                                      # (N, D_out)


if __name__ == "__main__":
    # Small shapes consistent with the module: batch=2, embed_dim=32,
    # spatial (T,H,W)=(2,2,4) -> L=16, num_heads=4, output_dim=16.
    N, C = 2, 32
    T, H, W = 2, 2, 4
    L = T * H * W
    S = L + 1
    num_heads = 4
    D_out = 16

    key = jax.random.PRNGKey(0)
    ks = jax.random.split(key, 10)
    params = {
        "pos": jax.random.normal(ks[0], (S, C), jnp.float32) / math.sqrt(C),
        "wq": jax.random.normal(ks[1], (C, C), jnp.float32) * (1.0 / math.sqrt(C)),
        "bq": jax.random.normal(ks[2], (C,), jnp.float32) * 0.02,
        "wk": jax.random.normal(ks[3], (C, C), jnp.float32) * (1.0 / math.sqrt(C)),
        "bk": jax.random.normal(ks[4], (C,), jnp.float32) * 0.02,
        "wv": jax.random.normal(ks[5], (C, C), jnp.float32) * (1.0 / math.sqrt(C)),
        "bv": jax.random.normal(ks[6], (C,), jnp.float32) * 0.02,
        "wc": jax.random.normal(ks[7], (D_out, C), jnp.float32) * (1.0 / math.sqrt(C)),
        "bc": jax.random.normal(ks[8], (D_out,), jnp.float32) * 0.02,
    }
    x = jax.random.normal(ks[9], (N, C, T, H, W), jnp.float32)

    out = jax.block_until_ready(attention_pool_3d(x, params, num_heads))
    ref = jax.block_until_ready(attention_pool_3d_reference(x, params, num_heads))
    assert out.shape == (N, D_out), out.shape
    # Tolerance leaves headroom for the EUP approximate reciprocal used in the
    # softmax normalization (pl.reciprocal(..., approx=True)).
    np.testing.assert_allclose(np.asarray(out), np.asarray(ref), rtol=5e-3, atol=5e-3)
    print("KERNEL_OK")
</pallas_src>

<mosaic_0001>
module attributes {stable_mosaic.version = 11 : i64} {
  func.func @attention_pool_kernel(%arg0: i32, %arg1: memref<2x16x32xf32, #tpu.memory_space<vmem>>, %arg2: memref<1x32xf32, #tpu.memory_space<vmem>>, %arg3: memref<16x32xf32, #tpu.memory_space<vmem>>, %arg4: memref<32x32xf32, #tpu.memory_space<vmem>>, %arg5: memref<1x32xf32, #tpu.memory_space<vmem>>, %arg6: memref<32x64xf32, #tpu.memory_space<vmem>>, %arg7: memref<1x64xf32, #tpu.memory_space<vmem>>, %arg8: memref<32x16xf32, #tpu.memory_space<vmem>>, %arg9: memref<1x16xf32, #tpu.memory_space<vmem>>, %arg10: memref<32x4xf32, #tpu.memory_space<vmem>>, %arg11: memref<4x32xf32, #tpu.memory_space<vmem>>, %arg12: memref<2x16xf32, #tpu.memory_space<vmem>>) attributes {dimension_semantics = [#tpu.dimension_semantics<parallel>], iteration_bounds = array<i64: 1>, scalar_prefetch = 0 : i64, scratch_operands = 0 : i64, tpu.core_type = #tpu.core_type<tc>, window_params = [{transform_indices = @transform_0, window_bounds = array<i64: 2, 16, 32>}, {pipeline_mode = #tpu.pipeline_mode<synchronous>, transform_indices = @transform_1, window_bounds = array<i64: 1, 32>}, {pipeline_mode = #tpu.pipeline_mode<synchronous>, transform_indices = @transform_2, window_bounds = array<i64: 16, 32>}, {pipeline_mode = #tpu.pipeline_mode<synchronous>, transform_indices = @transform_3, window_bounds = array<i64: 32, 32>}, {pipeline_mode = #tpu.pipeline_mode<synchronous>, transform_indices = @transform_4, window_bounds = array<i64: 1, 32>}, {pipeline_mode = #tpu.pipeline_mode<synchronous>, transform_indices = @transform_5, window_bounds = array<i64: 32, 64>}, {pipeline_mode = #tpu.pipeline_mode<synchronous>, transform_indices = @transform_6, window_bounds = array<i64: 1, 64>}, {pipeline_mode = #tpu.pipeline_mode<synchronous>, transform_indices = @transform_7, window_bounds = array<i64: 32, 16>}, {pipeline_mode = #tpu.pipeline_mode<synchronous>, transform_indices = @transform_8, window_bounds = array<i64: 1, 16>}, {pipeline_mode = #tpu.pipeline_mode<synchronous>, transform_indices = @transform_9, window_bounds = array<i64: 32, 4>}, {pipeline_mode = #tpu.pipeline_mode<synchronous>, transform_indices = @transform_10, window_bounds = array<i64: 4, 32>}, {transform_indices = @transform_11, window_bounds = array<i64: 2, 16>}]} {
    %c0 = arith.constant 0 : index
    %c0_0 = arith.constant 0 : index
    %c0_1 = arith.constant 0 : index
    %0 = vector.load %arg1[%c0, %c0_0, %c0_1] : memref<2x16x32xf32, #tpu.memory_space<vmem>>, vector<2x16x32xf32>
    %c0_2 = arith.constant 0 : index
    %c0_3 = arith.constant 0 : index
    %1 = vector.load %arg2[%c0_2, %c0_3] : memref<1x32xf32, #tpu.memory_space<vmem>>, vector<1x32xf32>
    %c0_4 = arith.constant 0 : index
    %c0_5 = arith.constant 0 : index
    %2 = vector.load %arg3[%c0_4, %c0_5] : memref<16x32xf32, #tpu.memory_space<vmem>>, vector<16x32xf32>
    %c0_6 = arith.constant 0 : index
    %c0_7 = arith.constant 0 : index
    %3 = vector.load %arg10[%c0_6, %c0_7] : memref<32x4xf32, #tpu.memory_space<vmem>>, vector<32x4xf32>
    %c0_8 = arith.constant 0 : index
    %c0_9 = arith.constant 0 : index
    %4 = vector.load %arg11[%c0_8, %c0_9] : memref<4x32xf32, #tpu.memory_space<vmem>>, vector<4x32xf32>
    %cst = arith.constant dense<0.000000e+00> : vector<2x32xf32>
    %5 = vector.multi_reduction <add>, %0, %cst [1] : vector<2x16x32xf32> to vector<2x32xf32>
    %cst_10 = arith.constant 1.600000e+01 : f32
    %6 = vector.broadcast %cst_10 : f32 to vector<2x32xf32>
    %7 = arith.divf %5, %6 : vector<2x32xf32>
    %8 = vector.broadcast %1 : vector<1x32xf32> to vector<2x32xf32>
    %9 = arith.addf %7, %8 : vector<2x32xf32>
    %10 = vector.shape_cast %2 : vector<16x32xf32> to vector<1x16x32xf32>
    %11 = vector.broadcast %10 : vector<1x16x32xf32> to vector<2x16x32xf32>
    %12 = arith.addf %0, %11 : vector<2x16x32xf32>
    %13 = vector.shape_cast %12 : vector<2x16x32xf32> to vector<32x32xf32>
    %c0_11 = arith.constant 0 : index
    %c0_12 = arith.constant 0 : index
    %14 = vector.load %arg4[%c0_11, %c0_12] : memref<32x32xf32, #tpu.memory_space<vmem>>, vector<32x32xf32>
    %cst_13 = arith.constant dense<0.000000e+00> : vector<2x32xf32>
    %15 = tpu.matmul %9, %14, %cst_13 {dimension_numbers = #tpu.dot_dimension_numbers<[1], [0], [0], [1], [0, 0, 1, 1], [], []>} : vector<2x32xf32>, vector<32x32xf32>, vector<2x32xf32> -> vector<2x32xf32>
    %c0_14 = arith.constant 0 : index
    %c0_15 = arith.constant 0 : index
    %16 = vector.load %arg5[%c0_14, %c0_15] : memref<1x32xf32, #tpu.memory_space<vmem>>, vector<1x32xf32>
    %17 = vector.broadcast %16 : vector<1x32xf32> to vector<2x32xf32>
    %18 = arith.addf %15, %17 : vector<2x32xf32>
    %cst_16 = arith.constant 0.353553385 : f32
    %19 = vector.broadcast %cst_16 : f32 to vector<2x32xf32>
    %20 = arith.mulf %18, %19 : vector<2x32xf32>
    %c0_17 = arith.constant 0 : index
    %c0_18 = arith.constant 0 : index
    %21 = vector.load %arg6[%c0_17, %c0_18] : memref<32x64xf32, #tpu.memory_space<vmem>>, vector<32x64xf32>
    %c0_19 = arith.constant 0 : index
    %c0_20 = arith.constant 0 : index
    %22 = vector.load %arg7[%c0_19, %c0_20] : memref<1x64xf32, #tpu.memory_space<vmem>>, vector<1x64xf32>
    %cst_21 = arith.constant dense<0.000000e+00> : vector<2x64xf32>
    %23 = tpu.matmul %9, %21, %cst_21 {dimension_numbers = #tpu.dot_dimension_numbers<[1], [0], [0], [1], [0, 0, 1, 1], [], []>} : vector<2x32xf32>, vector<32x64xf32>, vector<2x64xf32> -> vector<2x64xf32>
    %24 = vector.broadcast %22 : vector<1x64xf32> to vector<2x64xf32>
    %25 = arith.addf %23, %24 : vector<2x64xf32>
    %cst_22 = arith.constant dense<0.000000e+00> : vector<32x64xf32>
    %26 = tpu.matmul %13, %21, %cst_22 {dimension_numbers = #tpu.dot_dimension_numbers<[1], [0], [0], [1], [0, 0, 1, 1], [], []>} : vector<32x32xf32>, vector<32x64xf32>, vector<32x64xf32> -> vector<32x64xf32>
    %27 = vector.broadcast %22 : vector<1x64xf32> to vector<32x64xf32>
    %28 = arith.addf %26, %27 : vector<32x64xf32>
    %29 = vector.extract_strided_slice %25 {offsets = [0, 0], sizes = [2, 32], strides = [1, 1]} : vector<2x64xf32> to vector<2x32xf32>
    %30 = vector.extract_strided_slice %25 {offsets = [0, 32], sizes = [2, 32], strides = [1, 1]} : vector<2x64xf32> to vector<2x32xf32>
    %31 = vector.extract_strided_slice %28 {offsets = [0, 0], sizes = [32, 32], strides = [1, 1]} : vector<32x64xf32> to vector<32x32xf32>
    %32 = vector.shape_cast %31 : vector<32x32xf32> to vector<2x16x32xf32>
    %33 = vector.extract_strided_slice %28 {offsets = [0, 32], sizes = [32, 32], strides = [1, 1]} : vector<32x64xf32> to vector<32x32xf32>
    %34 = vector.shape_cast %33 : vector<32x32xf32> to vector<2x16x32xf32>
    %35 = arith.mulf %20, %29 : vector<2x32xf32>
    %cst_23 = arith.constant dense<0.000000e+00> : vector<2x4xf32>
    %36 = tpu.matmul %35, %3, %cst_23 {dimension_numbers = #tpu.dot_dimension_numbers<[1], [0], [0], [1], [0, 0, 1, 1], [], []>} : vector<2x32xf32>, vector<32x4xf32>, vector<2x4xf32> -> vector<2x4xf32>
    %37 = vector.shape_cast %20 : vector<2x32xf32> to vector<2x1x32xf32>
    %38 = vector.broadcast %37 : vector<2x1x32xf32> to vector<2x16x32xf32>
    %39 = arith.mulf %32, %38 : vector<2x16x32xf32>
    %40 = vector.shape_cast %39 : vector<2x16x32xf32> to vector<32x32xf32>
    %cst_24 = arith.constant dense<0.000000e+00> : vector<32x4xf32>
    %41 = tpu.matmul %40, %3, %cst_24 {dimension_numbers = #tpu.dot_dimension_numbers<[1], [0], [0], [1], [0, 0, 1, 1], [], []>} : vector<32x32xf32>, vector<32x4xf32>, vector<32x4xf32> -> vector<32x4xf32>
    %42 = vector.shape_cast %41 : vector<32x4xf32> to vector<2x16x4xf32>
    %cst_25 = arith.constant dense<0xFF800000> : vector<2x4xf32>
    %43 = vector.multi_reduction <maximumf>, %42, %cst_25 [1] : vector<2x16x4xf32> to vector<2x4xf32>
    %44 = arith.maximumf %36, %43 : vector<2x4xf32>
    %45 = arith.subf %36, %44 : vector<2x4xf32>
    %46 = math.exp %45 : vector<2x4xf32>
    %47 = vector.shape_cast %44 : vector<2x4xf32> to vector<2x1x4xf32>
    %48 = vector.broadcast %47 : vector<2x1x4xf32> to vector<2x16x4xf32>
    %49 = arith.subf %42, %48 : vector<2x16x4xf32>
    %50 = math.exp %49 : vector<2x16x4xf32>
    %cst_26 = arith.constant dense<0.000000e+00> : vector<2x4xf32>
    %51 = vector.multi_reduction <add>, %50, %cst_26 [1] : vector<2x16x4xf32> to vector<2x4xf32>
    %52 = arith.addf %46, %51 : vector<2x4xf32>
    %53 = tpu.reciprocal %52 {approx = true} : vector<2x4xf32> -> vector<2x4xf32>
    %54 = arith.mulf %46, %53 : vector<2x4xf32>
    %55 = vector.shape_cast %53 : vector<2x4xf32> to vector<2x1x4xf32>
    %56 = vector.broadcast %55 : vector<2x1x4xf32> to vector<2x16x4xf32>
    %57 = arith.mulf %50, %56 : vector<2x16x4xf32>
    %cst_27 = arith.constant dense<0.000000e+00> : vector<2x32xf32>
    %58 = tpu.matmul %54, %4, %cst_27 {dimension_numbers = #tpu.dot_dimension_numbers<[1], [0], [0], [1], [0, 0, 1, 1], [], []>} : vector<2x4xf32>, vector<4x32xf32>, vector<2x32xf32> -> vector<2x32xf32>
    %59 = vector.shape_cast %57 : vector<2x16x4xf32> to vector<32x4xf32>
    %cst_28 = arith.constant dense<0.000000e+00> : vector<32x32xf32>
    %60 = tpu.matmul %59, %4, %cst_28 {dimension_numbers = #tpu.dot_dimension_numbers<[1], [0], [0], [1], [0, 0, 1, 1], [], []>} : vector<32x4xf32>, vector<4x32xf32>, vector<32x32xf32> -> vector<32x32xf32>
    %61 = vector.shape_cast %60 : vector<32x32xf32> to vector<2x16x32xf32>
    %62 = arith.mulf %58, %30 : vector<2x32xf32>
    %63 = arith.mulf %61, %34 : vector<2x16x32xf32>
    %cst_29 = arith.constant dense<0.000000e+00> : vector<2x32xf32>
    %64 = vector.multi_reduction <add>, %63, %cst_29 [1] : vector<2x16x32xf32> to vector<2x32xf32>
    %65 = arith.addf %62, %64 : vector<2x32xf32>
    %c0_30 = arith.constant 0 : index
    %c0_31 = arith.constant 0 : index
    %66 = vector.load %arg8[%c0_30, %c0_31] : memref<32x16xf32, #tpu.memory_space<vmem>>, vector<32x16xf32>
    %cst_32 = arith.constant dense<0.000000e+00> : vector<2x16xf32>
    %67 = tpu.matmul %65, %66, %cst_32 {dimension_numbers = #tpu.dot_dimension_numbers<[1], [0], [0], [1], [0, 0, 1, 1], [], []>} : vector<2x32xf32>, vector<32x16xf32>, vector<2x16xf32> -> vector<2x16xf32>
    %c0_33 = arith.constant 0 : index
    %c0_34 = arith.constant 0 : index
    %68 = vector.load %arg9[%c0_33, %c0_34] : memref<1x16xf32, #tpu.memory_space<vmem>>, vector<1x16xf32>
    %69 = vector.broadcast %68 : vector<1x16xf32> to vector<2x16xf32>
    %70 = arith.addf %67, %69 : vector<2x16xf32>
    %c0_35 = arith.constant 0 : index
    %c0_36 = arith.constant 0 : index
    %71 = vector.load %arg12[%c0_35, %c0_36] : memref<2x16xf32, #tpu.memory_space<vmem>>, vector<2x16xf32>
    tpu.vector_store %arg12[%c0_35, %c0_36], %70 {strides = array<i32>} : memref<2x16xf32, #tpu.memory_space<vmem>>, vector<2x16xf32>,
    return
  }
  func.func @transform_0(%arg0: i32) -> (i32, i32, i32) {
    %c0_i32 = arith.constant 0 : i32
    %c0_i32_0 = arith.constant 0 : i32
    %c0_i32_1 = arith.constant 0 : i32
    return %arg0, %c0_i32, %c0_i32_0 : i32, i32, i32
  }
  func.func @transform_1(%arg0: i32) -> (i32, i32) {
    %c0_i32 = arith.constant 0 : i32
    %c0_i32_0 = arith.constant 0 : i32
    %c0_i32_1 = arith.constant 0 : i32
    return %c0_i32, %c0_i32_0 : i32, i32
  }
  func.func @transform_2(%arg0: i32) -> (i32, i32) {
    %c0_i32 = arith.constant 0 : i32
    %c0_i32_0 = arith.constant 0 : i32
    %c0_i32_1 = arith.constant 0 : i32
    return %c0_i32, %c0_i32_0 : i32, i32
  }
  func.func @transform_3(%arg0: i32) -> (i32, i32) {
    %c0_i32 = arith.constant 0 : i32
    %c0_i32_0 = arith.constant 0 : i32
    %c0_i32_1 = arith.constant 0 : i32
    return %c0_i32, %c0_i32_0 : i32, i32
  }
  func.func @transform_4(%arg0: i32) -> (i32, i32) {
    %c0_i32 = arith.constant 0 : i32
    %c0_i32_0 = arith.constant 0 : i32
    %c0_i32_1 = arith.constant 0 : i32
    return %c0_i32, %c0_i32_0 : i32, i32
  }
  func.func @transform_5(%arg0: i32) -> (i32, i32) {
    %c0_i32 = arith.constant 0 : i32
    %c0_i32_0 = arith.constant 0 : i32
    %c0_i32_1 = arith.constant 0 : i32
    return %c0_i32, %c0_i32_0 : i32, i32
  }
  func.func @transform_6(%arg0: i32) -> (i32, i32) {
    %c0_i32 = arith.constant 0 : i32
    %c0_i32_0 = arith.constant 0 : i32
    %c0_i32_1 = arith.constant 0 : i32
    return %c0_i32, %c0_i32_0 : i32, i32
  }
  func.func @transform_7(%arg0: i32) -> (i32, i32) {
    %c0_i32 = arith.constant 0 : i32
    %c0_i32_0 = arith.constant 0 : i32
    %c0_i32_1 = arith.constant 0 : i32
    return %c0_i32, %c0_i32_0 : i32, i32
  }
  func.func @transform_8(%arg0: i32) -> (i32, i32) {
    %c0_i32 = arith.constant 0 : i32
    %c0_i32_0 = arith.constant 0 : i32
    %c0_i32_1 = arith.constant 0 : i32
    return %c0_i32, %c0_i32_0 : i32, i32
  }
  func.func @transform_9(%arg0: i32) -> (i32, i32) {
    %c0_i32 = arith.constant 0 : i32
    %c0_i32_0 = arith.constant 0 : i32
    %c0_i32_1 = arith.constant 0 : i32
    return %c0_i32, %c0_i32_0 : i32, i32
  }
  func.func @transform_10(%arg0: i32) -> (i32, i32) {
    %c0_i32 = arith.constant 0 : i32
    %c0_i32_0 = arith.constant 0 : i32
    %c0_i32_1 = arith.constant 0 : i32
    return %c0_i32, %c0_i32_0 : i32, i32
  }
  func.func @transform_11(%arg0: i32) -> (i32, i32) {
    %c0_i32 = arith.constant 0 : i32
    %c0_i32_0 = arith.constant 0 : i32
    return %arg0, %c0_i32 : i32, i32
  }
}

</mosaic_0001>

<llo_original>
// kernel: tpu_custom_call.1
$region0: #{tpu_custom_call.1}
  #allocation0 [shape = 'u32[]', space=smem, size = 0x4, offset = 0x4, fixed_abs, tag = 'smem constant byte address 0x4 - core index']
  #allocation1 [shape = 'u32[72,128]{1,0:T(1,128)}', space=vmem, size = 0x9000, scoped, tag = 'internal scratch']
  %s0 = inlined_call_operand.vmem [shape: f32[2,16,32], index: 0, kind: input, shape index: {}]
  %s1 = inlined_call_operand.hbm [shape: f32[1,32], index: 1, kind: input, shape index: {}]
  %s2 = inlined_call_operand.vmem [shape: f32[16,32], index: 2, kind: input, shape index: {}]
  %s3 = inlined_call_operand.vmem [shape: f32[32,32], index: 3, kind: input, shape index: {}]
  %s4 = inlined_call_operand.hbm [shape: f32[1,32], index: 4, kind: input, shape index: {}]
  %s5 = inlined_call_operand.hbm [shape: f32[32,64], index: 5, kind: input, shape index: {}]
  %s6 = inlined_call_operand.vmem [shape: f32[1,64], index: 6, kind: input, shape index: {}]
  %s7 = inlined_call_operand.vmem [shape: f32[32,16], index: 7, kind: input, shape index: {}]
  %s8 = inlined_call_operand.vmem [shape: f32[1,16], index: 8, kind: input, shape index: {}]
  %s9 = inlined_call_operand.vmem [shape: f32[32,4], index: 9, kind: input, shape index: {}]
  %s10 = inlined_call_operand.vmem [shape: f32[4,32], index: 10, kind: input, shape index: {}]
  %s11 = inlined_call_operand.hbm [shape: f32[2,16], index: 11, kind: output, shape index: {}]
  %s12 = sld [smem:[#allocation0]]
  $region66: #{tpu_custom_call.1} parent=0
    _
  %s14 = ssub.s32 1, %s12
  %s15 = scalar_select 0, %s14, %s12
  $region1: #{tpu_custom_call.1} parent=0
    #allocation2 [shape = 'u8[512]{0}', space=vmem, size = 0x400, scoped, tag = 'input window, operand 1, single buffered']
    #allocation3 [shape = 's32[1]{0}', space=sflag, size = 0x4, scoped, tag = 'scoped memory for tpu_custom_call.1']
    #allocation4 [shape = 's32[1]{0}', space=sflag, size = 0x4, scoped, tag = 'scoped memory for tpu_custom_call.1']
    #allocation5 [shape = 'u8[512]{0}', space=vmem, size = 0x400, scoped, tag = 'input window, operand 4, single buffered']
    #allocation6 [shape = 's32[1]{0}', space=sflag, size = 0x4, scoped, tag = 'scoped memory for tpu_custom_call.1']
    #allocation7 [shape = 'u8[16384]{0}', space=vmem, size = 0x4000, scoped, tag = 'input window, operand 5, single buffered']
    #allocation8 [shape = 'u8[1024]{0}', space=vmem, size = 0x400, scoped, tag = 'output window, operand 0, single buffered']
    %16 = vsyncpa [#allocation3], 0
    %17 = vsyncpa [#allocation6], 0
    %18 = vsyncpa [#allocation4], 0
    // Predicated region
    $region2: #{tpu_custom_call.1} parent=1 // pred_check
      _
    $region3: #{tpu_custom_call.1} parent=1 // pred_check_branch
      %20 = sbr.rel (0) target = $region5
    $region4: #{tpu_custom_call.1} parent=1 // pred_region
      _
    $region5: #{tpu_custom_call.1} parent=1 // pred_fallthru
      _
    // Predicated region
    $region6: #{tpu_custom_call.1} parent=1 // pred_check
      _
    $region7: #{tpu_custom_call.1} parent=1 // pred_check_branch
      %22 = sbr.rel (0) target = $region9
    $region8: #{tpu_custom_call.1} parent=1 // pred_region
      %24 = vsyncadd [#allocation3], 0
      %s26 = sshll.u32 %s1, 4
      %s27 = int_to_ptr.hbm [resolvable:$true] %s26
      %s28 = sshll.u32 [#allocation2], 4
      %s29 = int_to_ptr.vmem [resolvable:$true] %s28
      %31 = dma.hbm_to_vmem [thread:$0]  %s27, 16, %s29, [#allocation3]
    $region9: #{tpu_custom_call.1} parent=1 // pred_fallthru
      _
    // Predicated region
    $region10: #{tpu_custom_call.1} parent=1 // pred_check
      _
    $region11: #{tpu_custom_call.1} parent=1 // pred_check_branch
      %33 = sbr.rel (0) target = $region13
    $region12: #{tpu_custom_call.1} parent=1 // pred_region
      _
    $region13: #{tpu_custom_call.1} parent=1 // pred_fallthru
      _
    // Predicated region
    $region14: #{tpu_custom_call.1} parent=1 // pred_check
      _
    $region15: #{tpu_custom_call.1} parent=1 // pred_check_branch
      %35 = sbr.rel (0) target = $region17
    $region16: #{tpu_custom_call.1} parent=1 // pred_region
      _
    $region17: #{tpu_custom_call.1} parent=1 // pred_fallthru
      _
    // Predicated region
    $region18: #{tpu_custom_call.1} parent=1 // pred_check
      _
    $region19: #{tpu_custom_call.1} parent=1 // pred_check_branch
      %37 = sbr.rel (0) target = $region21
    $region20: #{tpu_custom_call.1} parent=1 // pred_region
      %39 = vsyncadd [#allocation6], 0
      %s41 = sshll.u32 %s4, 4
      %s42 = int_to_ptr.hbm [resolvable:$true] %s41
      %s43 = sshll.u32 [#allocation5], 4
      %s44 = int_to_ptr.vmem [resolvable:$true] %s43
      %46 = dma.hbm_to_vmem [thread:$0]  %s42, 16, %s44, [#allocation6]
    $region21: #{tpu_custom_call.1} parent=1 // pred_fallthru
      _
    // Predicated region
    $region22: #{tpu_custom_call.1} parent=1 // pred_check
      _
    $region23: #{tpu_custom_call.1} parent=1 // pred_check_branch
      %48 = sbr.rel (0) target = $region25
    $region24: #{tpu_custom_call.1} parent=1 // pred_region
      %50 = vsyncadd [#allocation6], 0
      %s51 = sshll.u32 %s5, 4
      %s52 = int_to_ptr.hbm [resolvable:$true] %s51
      %s53 = sshll.u32 [#allocation7], 4
      %s54 = int_to_ptr.vmem [resolvable:$true] %s53
      %59 = dma.hbm_to_vmem [thread:$0]  %s52, 512, %s54, [#allocation6], 128, 128, 8
    $region25: #{tpu_custom_call.1} parent=1 // pred_fallthru
      _
    // Predicated region
    $region26: #{tpu_custom_call.1} parent=1 // pred_check
      _
    $region27: #{tpu_custom_call.1} parent=1 // pred_check_branch
      %61 = sbr.rel (0) target = $region29
    $region28: #{tpu_custom_call.1} parent=1 // pred_region
      _
    $region29: #{tpu_custom_call.1} parent=1 // pred_fallthru
      _
    // Predicated region
    $region30: #{tpu_custom_call.1} parent=1 // pred_check
      _
    $region31: #{tpu_custom_call.1} parent=1 // pred_check_branch
      %63 = sbr.rel (0) target = $region33
    $region32: #{tpu_custom_call.1} parent=1 // pred_region
      _
    $region33: #{tpu_custom_call.1} parent=1 // pred_fallthru
      _
    // Predicated region
    $region34: #{tpu_custom_call.1} parent=1 // pred_check
      _
    $region35: #{tpu_custom_call.1} parent=1 // pred_check_branch
      %65 = sbr.rel (0) target = $region37
    $region36: #{tpu_custom_call.1} parent=1 // pred_region
      _
    $region37: #{tpu_custom_call.1} parent=1 // pred_fallthru
      _
    // Predicated region
    $region38: #{tpu_custom_call.1} parent=1 // pred_check
      _
    $region39: #{tpu_custom_call.1} parent=1 // pred_check_branch
      %67 = sbr.rel (0) target = $region41
    $region40: #{tpu_custom_call.1} parent=1 // pred_region
      _
    $region41: #{tpu_custom_call.1} parent=1 // pred_fallthru
      _
    // Predicated region
    $region42: #{tpu_custom_call.1} parent=1 // pred_check
      _
    $region43: #{tpu_custom_call.1} parent=1 // pred_check_branch
      %69 = sbr.rel (0) target = $region45
    $region44: #{tpu_custom_call.1} parent=1 // pred_region
      _
    $region45: #{tpu_custom_call.1} parent=1 // pred_fallthru
      _
    // Predicated region
    $region46: #{tpu_custom_call.1} parent=1 // pred_check
      _
    $region47: #{tpu_custom_call.1} parent=1 // pred_check_branch
      %71 = sbr.rel (0) target = $region49
    $region48: #{tpu_custom_call.1} parent=1 // pred_region
      %73 = dma.done [#allocation3], 16
    $region49: #{tpu_custom_call.1} parent=1 // pred_fallthru
      _
    // Predicated region
    $region50: #{tpu_custom_call.1} parent=1 // pred_check
      _
    $region51: #{tpu_custom_call.1} parent=1 // pred_check_branch
      %75 = sbr.rel (0) target = $region53
    $region52: #{tpu_custom_call.1} parent=1 // pred_region
      %77 = dma.done [#allocation6], 16
    $region53: #{tpu_custom_call.1} parent=1 // pred_fallthru
      _
    // Predicated region
    $region54: #{tpu_custom_call.1} parent=1 // pred_check
      _
    $region55: #{tpu_custom_call.1} parent=1 // pred_check_branch
      %79 = sbr.rel (0) target = $region57
    $region56: #{tpu_custom_call.1} parent=1 // pred_region
      %81 = dma.done [#allocation6], 512
    $region57: #{tpu_custom_call.1} parent=1 // pred_fallthru
      _
    %v82 = vld [vmem:[%s0] sm:$0xff]
    %v83 = vld [vmem:[%s0 + $0x8] sm:$0xff]
    %v84 = vld [vmem:[%s0 + $0x10] sm:$0xff]
    %v85 = vld [vmem:[%s0 + $0x18] sm:$0xff]
    %v86 = vld [vmem:[#allocation2] sm:$0x1]
    %v87 = vld [vmem:[%s2] sm:$0xff]
    %v88 = vld [vmem:[%s2 + $0x8] sm:$0xff]
    %v89 = vld [vmem:[%s9] sm:$0xff]
    %v90 = vld [vmem:[%s9 + $0x8] sm:$0xff]
    %v91 = vld [vmem:[%s9 + $0x10] sm:$0xff]
    %v92 = vld [vmem:[%s9 + $0x18] sm:$0xff]
    %v93 = vld [vmem:[%s10] sm:$0xf]
    %vm94 = vcmask 261120
    %v95 = vsel %vm94, %v82, 0.0
    %v96 = vsel %vm94, %v83, 0.0
    %v97 = vadd.f32 %v95, %v96
    %v98 = vrot.slane %v97, 4
    %v99 = vadd.f32 %v97, %v98
    %v100 = vrot.slane %v99, 2
    %v101 = vadd.f32 %v99, %v100
    %v102 = vrot.slane %v101, 1
    %v103 = vadd.f32 %v101, %v102
    %v104 = vsel %vm94, %v84, 0.0
    %v105 = vsel %vm94, %v85, 0.0
    %v106 = vadd.f32 %v104, %v105
    %v107 = vrot.slane %v106, 4
    %v108 = vadd.f32 %v106, %v107
    %v109 = vrot.slane %v108, 2
    %v110 = vadd.f32 %v108, %v109
    %v111 = vrot.slane %v110, 1
    %v112 = vadd.f32 %v110, %v111
    %v113 = vrcp.pop 16.0
    %v114 = vmul.f32 16.0, %v113
    %v115 = vsub.f32 1.0, %v114
    %v116 = vmul.f32 %v113, %v115
    %v117 = vadd.f32 %v113, %v116
    %vm118 = vweird.f32 %v113
    %v119 = vsel %vm118, %v113, %v117
    %v120 = vmul.f32 %v103, %v119
    %v121 = vmul.f32 %v112, %v119
    %v123 = vperm.slane %v86, 0
    %v125 = vadd.f32 %v120, %v123
    %v126 = vadd.f32 %v121, %v123
    %v127 = vadd.f32 %v82, %v87
    %v128 = vadd.f32 %v83, %v88
    %v129 = vadd.f32 %v84, %v87
    %v130 = vadd.f32 %v85, %v88
    %v131 = vld [vmem:[%s3] sm:$0xff]
    %v132 = vld [vmem:[%s3 + $0x8] sm:$0xff]
    %v133 = vld [vmem:[%s3 + $0x10] sm:$0xff]
    %v134 = vld [vmem:[%s3 + $0x18] sm:$0xff]
    %v135 = vld [vmem:[#allocation5] sm:$0x1]
    %v137 = vperm.slane %v135, 0
    %v141 = vrot.slane %v126, 7
    %vm142 = vcmask 1041409
    %v143 = vsel %vm142, %v141, %v125
    %v144 = vsel %vm94, %v143, 0
    %146 = vmatpush.msra.mxu0 0.0
    %147 = vmatpush.msra.mxu0 0.0
    %148 = vmatpush.msra.mxu0 0.0
    %149 = vmatpush.msra.mxu0 0.0
    %150 = vmatpush.msra.mxu0 0.0
    %151 = vmatpush.msra.mxu0 0.0
    %152 = vmatpush.msra.mxu0 0.0
    %153 = vmatpush.msra.mxu0 0.0
    %154 = vmatpush.msra.mxu0 0.0
    %155 = vmatpush.msra.mxu0 0.0
    %156 = vmatpush.msra.mxu0 0.0
    %157 = vmatpush.msra.mxu0 0.0
    %158 = vmatpush.msra.mxu0 %v134
    %159 = vmatpush.msra.mxu0 %v133
    %160 = vmatpush.msra.mxu0 %v132
    %161 = vmatpush.msra.mxu0 %v131
    %162 = vmatmul.f32.gmra.mxu0 %v144
    %v163 = vpop.f32.mrf.mxu0
    %v164 = vadd.f32 %v137, %v163
    %165 = vdwg.mxu0
    %v166 = vmul.f32 %v164, 0.35355338
    %v167 = vld [vmem:[#allocation7] sm:$0xff]
    %v168 = vld [vmem:[#allocation7 + $0x8] sm:$0xff]
    %v169 = vld [vmem:[#allocation7 + $0x10] sm:$0xff]
    %v170 = vld [vmem:[#allocation7 + $0x18] sm:$0xff]
    %v171 = vld [vmem:[%s6] sm:$0x1]
    %v173 = vperm.slane %v171, 0
    %175 = vmatpush.msra.mxu0 0.0
    %176 = vmatpush.msra.mxu0 0.0
    %177 = vmatpush.msra.mxu0 0.0
    %178 = vmatpush.msra.mxu0 0.0
    %179 = vmatpush.msra.mxu0 0.0
    %180 = vmatpush.msra.mxu0 0.0
    %181 = vmatpush.msra.mxu0 0.0
    %182 = vmatpush.msra.mxu0 0.0
    %183 = vmatpush.msra.mxu0 0.0
    %184 = vmatpush.msra.mxu0 0.0
    %185 = vmatpush.msra.mxu0 0.0
    %186 = vmatpush.msra.mxu0 0.0
    %187 = vmatpush.msra.mxu0 %v170
    %188 = vmatpush.msra.mxu0 %v169
    %189 = vmatpush.msra.mxu0 %v168
    %190 = vmatpush.msra.mxu0 %v167
    %191 = vmatmul.f32.gmra.mxu0 %v144
    %v192 = vpop.f32.mrf.mxu0
    %v193 = vadd.f32 %v173, %v192
    %194 = vdwg.mxu0
    %v196 = vsel %vm94, %v127, 0
    %v199 = vsel %vm94, %v128, 0
    %v202 = vsel %vm94, %v129, 0
    %v205 = vsel %vm94, %v130, 0
    %207 = vmatpush.msra.mxu0 0.0
    %208 = vmatpush.msra.mxu0 0.0
    %209 = vmatpush.msra.mxu0 0.0
    %210 = vmatpush.msra.mxu0 0.0
    %211 = vmatpush.msra.mxu0 0.0
    %212 = vmatpush.msra.mxu0 0.0
    %213 = vmatpush.msra.mxu0 0.0
    %214 = vmatpush.msra.mxu0 0.0
    %215 = vmatpush.msra.mxu0 0.0
    %216 = vmatpush.msra.mxu0 0.0
    %217 = vmatpush.msra.mxu0 0.0
    %218 = vmatpush.msra.mxu0 0.0
    %219 = vmatpush.msra.mxu0 %v170
    %220 = vmatpush.msra.mxu0 %v169
    %221 = vmatpush.msra.mxu0 %v168
    %222 = vmatpush.msra.mxu0 %v167
    %223 = vmatmul.f32.gmra.mxu0 %v196
    %v224 = vpop.f32.mrf.mxu0
    %v225 = vadd.f32 %v173, %v224
    %226 = vmatmul.f32.gmra.mxu0 %v199
    %v227 = vpop.f32.mrf.mxu0
    %v228 = vadd.f32 %v173, %v227
    %229 = vmatmul.f32.gmra.mxu0 %v202
    %v230 = vpop.f32.mrf.mxu0
    %v231 = vadd.f32 %v173, %v230
    %232 = vmatmul.f32.gmra.mxu0 %v205
    %v233 = vpop.f32.mrf.mxu0
    %v234 = vadd.f32 %v173, %v233
    %235 = vdwg.mxu0
    %v236 = vmul.f32 %v166, %v193
    %v238 = vsel %vm94, %v236, 0
    %240 = vmatpush.msra.mxu0 0.0
    %241 = vmatpush.msra.mxu0 0.0
    %242 = vmatpush.msra.mxu0 0.0
    %243 = vmatpush.msra.mxu0 0.0
    %244 = vmatpush.msra.mxu0 0.0
    %245 = vmatpush.msra.mxu0 0.0
    %246 = vmatpush.msra.mxu0 0.0
    %247 = vmatpush.msra.mxu0 0.0
    %248 = vmatpush.msra.mxu0 0.0
    %249 = vmatpush.msra.mxu0 0.0
    %250 = vmatpush.msra.mxu0 0.0
    %251 = vmatpush.msra.mxu0 0.0
    %252 = vmatpush.msra.mxu0 %v92
    %253 = vmatpush.msra.mxu0 %v91
    %254 = vmatpush.msra.mxu0 %v90
    %255 = vmatpush.msra.mxu0 %v89
    %256 = vmatmul.f32.gmra.mxu0 %v238
    %v257 = vpop.f32.mrf.mxu0
    %v258 = vadd.f32 0.0, %v257
    %259 = vdwg.mxu0
    %v261 = vrot.slane %v166, 1
    %v262 = vperm.slane %v166, 0
    %v263 = vperm.slane %v261, 0
    %v266 = vmul.f32 %v225, %v262
    %v267 = vmul.f32 %v228, %v262
    %v268 = vmul.f32 %v231, %v263
    %v269 = vmul.f32 %v234, %v263
    %v271 = vsel %vm94, %v266, 0
    %v274 = vsel %vm94, %v267, 0
    %v277 = vsel %vm94, %v268, 0
    %v280 = vsel %vm94, %v269, 0
    %282 = vmatpush.msra.mxu0 0.0
    %283 = vmatpush.msra.mxu0 0.0
    %284 = vmatpush.msra.mxu0 0.0
    %285 = vmatpush.msra.mxu0 0.0
    %286 = vmatpush.msra.mxu0 0.0
    %287 = vmatpush.msra.mxu0 0.0
    %288 = vmatpush.msra.mxu0 0.0
    %289 = vmatpush.msra.mxu0 0.0
    %290 = vmatpush.msra.mxu0 0.0
    %291 = vmatpush.msra.mxu0 0.0
    %292 = vmatpush.msra.mxu0 0.0
    %293 = vmatpush.msra.mxu0 0.0
    %294 = vmatpush.msra.mxu0 %v92
    %295 = vmatpush.msra.mxu0 %v91
    %296 = vmatpush.msra.mxu0 %v90
    %297 = vmatpush.msra.mxu0 %v89
    %298 = vmatmul.f32.gmra.mxu0 %v271
    %v299 = vpop.f32.mrf.mxu0
    %v300 = vadd.f32 0.0, %v299
    %301 = vmatmul.f32.gmra.mxu0 %v274
    %v302 = vpop.f32.mrf.mxu0
    %v303 = vadd.f32 0.0, %v302
    %304 = vmatmul.f32.gmra.mxu0 %v277
    %v305 = vpop.f32.mrf.mxu0
    %v306 = vadd.f32 0.0, %v305
    %307 = vmatmul.f32.gmra.mxu0 %v280
    %v308 = vpop.f32.mrf.mxu0
    %v309 = vadd.f32 0.0, %v308
    %310 = vdwg.mxu0
    %vm311 = vcmask 31744
    %v312 = vsel %vm311, %v300, -inf
    %v313 = vsel %vm311, %v303, -inf
    %v314 = vmax.f32 %v312, %v313
    %v315 = vrot.slane %v314, 4
    %v316 = vmax.f32 %v314, %v315
    %v317 = vrot.slane %v316, 2
    %v318 = vmax.f32 %v316, %v317
    %v319 = vrot.slane %v318, 1
    %v320 = vmax.f32 %v318, %v319
    %v321 = vsel %vm311, %v306, -inf
    %v322 = vsel %vm311, %v309, -inf
    %v323 = vmax.f32 %v321, %v322
    %v324 = vrot.slane %v323, 4
    %v325 = vmax.f32 %v323, %v324
    %v326 = vrot.slane %v325, 2
    %v327 = vmax.f32 %v325, %v326
    %v328 = vrot.slane %v327, 1
    %v329 = vmax.f32 %v327, %v328
    %v332 = vsel %vm142, %v329, %v320
    %v334 = vmax.f32 %v258, %v332
    %v335 = vsub.f32 %v258, %v334
    %v336 = vmul.f32 %v335, 1.442695
    %v337 = vpow.pop %v336
    %v339 = vrot.slane %v334, 1
    %v340 = vperm.slane %v334, 0
    %v341 = vperm.slane %v339, 0
    %v344 = vsub.f32 %v300, %v340
    %v345 = vsub.f32 %v303, %v340
    %v346 = vsub.f32 %v306, %v341
    %v347 = vsub.f32 %v309, %v341
    %v348 = vmul.f32 %v344, 1.442695
    %v349 = vpow.pop %v348
    %v350 = vmul.f32 %v345, 1.442695
    %v351 = vpow.pop %v350
    %v352 = vmul.f32 %v346, 1.442695
    %v353 = vpow.pop %v352
    %v354 = vmul.f32 %v347, 1.442695
    %v355 = vpow.pop %v354
    %v356 = vsel %vm311, %v349, 0.0
    %v357 = vsel %vm311, %v351, 0.0
    %v358 = vadd.f32 %v356, %v357
    %v359 = vrot.slane %v358, 4
    %v360 = vadd.f32 %v358, %v359
    %v361 = vrot.slane %v360, 2
    %v362 = vadd.f32 %v360, %v361
    %v363 = vrot.slane %v362, 1
    %v364 = vadd.f32 %v362, %v363
    %v365 = vsel %vm311, %v353, 0.0
    %v366 = vsel %vm311, %v355, 0.0
    %v367 = vadd.f32 %v365, %v366
    %v368 = vrot.slane %v367, 4
    %v369 = vadd.f32 %v367, %v368
    %v370 = vrot.slane %v369, 2
    %v371 = vadd.f32 %v369, %v370
    %v372 = vrot.slane %v371, 1
    %v373 = vadd.f32 %v371, %v372
    %v376 = vsel %vm142, %v373, %v364
    %v378 = vadd.f32 %v337, %v376
    %v379 = vrcp.pop %v378
    %v380 = vmul.f32 %v337, %v379
    %v382 = vrot.slane %v379, 1
    %v383 = vperm.slane %v379, 0
    %v384 = vperm.slane %v382, 0
    %v387 = vmul.f32 %v349, %v383
    %v388 = vmul.f32 %v351, %v383
    %v389 = vmul.f32 %v353, %v384
    %v390 = vmul.f32 %v355, %v384
    %v392 = vsel %vm311, %v380, 0
    %vm394 = vcmask 1043456
    %v396 = vsel %vm394, %v93, 0
    %398 = vmatpush.msra.mxu0 0.0
    %399 = vmatpush.msra.mxu0 0.0
    %400 = vmatpush.msra.mxu0 0.0
    %401 = vmatpush.msra.mxu0 0.0
    %402 = vmatpush.msra.mxu0 0.0
    %403 = vmatpush.msra.mxu0 0.0
    %404 = vmatpush.msra.mxu0 0.0
    %405 = vmatpush.msra.mxu0 0.0
    %406 = vmatpush.msra.mxu0 0.0
    %407 = vmatpush.msra.mxu0 0.0
    %408 = vmatpush.msra.mxu0 0.0
    %409 = vmatpush.msra.mxu0 0.0
    %410 = vmatpush.msra.mxu0 0.0
    %411 = vmatpush.msra.mxu0 0.0
    %412 = vmatpush.msra.mxu0 0.0
    %413 = vmatpush.msra.mxu0 %v396
    %414 = vmatmul.f32.gmra.mxu0 %v392
    %v415 = vpop.f32.mrf.mxu0
    %v416 = vadd.f32 0.0, %v415
    %417 = vdwg.mxu0
    %v419 = vsel %vm311, %v387, 0
    %v422 = vsel %vm311, %v388, 0
    %v425 = vsel %vm311, %v389, 0
    %v428 = vsel %vm311, %v390, 0
    %430 = vmatpush.msra.mxu0 0.0
    %431 = vmatpush.msra.mxu0 0.0
    %432 = vmatpush.msra.mxu0 0.0
    %433 = vmatpush.msra.mxu0 0.0
    %434 = vmatpush.msra.mxu0 0.0
    %435 = vmatpush.msra.mxu0 0.0
    %436 = vmatpush.msra.mxu0 0.0
    %437 = vmatpush.msra.mxu0 0.0
    %438 = vmatpush.msra.mxu0 0.0
    %439 = vmatpush.msra.mxu0 0.0
    %440 = vmatpush.msra.mxu0 0.0
    %441 = vmatpush.msra.mxu0 0.0
    %442 = vmatpush.msra.mxu0 0.0
    %443 = vmatpush.msra.mxu0 0.0
    %444 = vmatpush.msra.mxu0 0.0
    %445 = vmatpush.msra.mxu0 %v396
    %446 = vmatmul.f32.gmra.mxu0 %v419
    %v447 = vpop.f32.mrf.mxu0
    %v448 = vadd.f32 0.0, %v447
    %449 = vmatmul.f32.gmra.mxu0 %v422
    %v450 = vpop.f32.mrf.mxu0
    %v451 = vadd.f32 0.0, %v450
    %452 = vmatmul.f32.gmra.mxu0 %v425
    %v453 = vpop.f32.mrf.mxu0
    %v454 = vadd.f32 0.0, %v453
    %455 = vmatmul.f32.gmra.mxu0 %v428
    %v456 = vpop.f32.mrf.mxu0
    %v457 = vadd.f32 0.0, %v456
    %458 = vdwg.mxu0
    %460 = vrot.lane.b32.xlu0 %v193, 96
    %v461 = vpop.permute.xlu0 %460
    %v463 = vmul.f32 %v416, %v461
    %468 = vrot.lane.b32.xlu0 %v225, 96
    %v469 = vpop.permute.xlu0 %468
    %470 = vrot.lane.b32.xlu0 %v228, 96
    %v471 = vpop.permute.xlu0 %470
    %472 = vrot.lane.b32.xlu0 %v231, 96
    %v473 = vpop.permute.xlu0 %472
    %474 = vrot.lane.b32.xlu0 %v234, 96
    %v475 = vpop.permute.xlu0 %474
    %v480 = vmul.f32 %v448, %v469
    %v481 = vmul.f32 %v451, %v471
    %v482 = vmul.f32 %v454, %v473
    %v483 = vmul.f32 %v457, %v475
    %v484 = vsel %vm94, %v480, 0.0
    %v485 = vsel %vm94, %v481, 0.0
    %v486 = vadd.f32 %v484, %v485
    %v487 = vrot.slane %v486, 4
    %v488 = vadd.f32 %v486, %v487
    %v489 = vrot.slane %v488, 2
    %v490 = vadd.f32 %v488, %v489
    %v491 = vrot.slane %v490, 1
    %v492 = vadd.f32 %v490, %v491
    %v493 = vsel %vm94, %v482, 0.0
    %v494 = vsel %vm94, %v483, 0.0
    %v495 = vadd.f32 %v493, %v494
    %v496 = vrot.slane %v495, 4
    %v497 = vadd.f32 %v495, %v496
    %v498 = vrot.slane %v497, 2
    %v499 = vadd.f32 %v497, %v498
    %v500 = vrot.slane %v499, 1
    %v501 = vadd.f32 %v499, %v500
    %v504 = vsel %vm142, %v501, %v492
    %v506 = vadd.f32 %v463, %v504
    %v507 = vld [vmem:[%s7] sm:$0xff]
    %v508 = vld [vmem:[%s7 + $0x8] sm:$0xff]
    %v509 = vld [vmem:[%s7 + $0x10] sm:$0xff]
    %v510 = vld [vmem:[%s7 + $0x18] sm:$0xff]
    %v511 = vld [vmem:[%s8] sm:$0x1]
    %v513 = vperm.slane %v511, 0
    %v516 = vsel %vm94, %v506, 0
    %518 = vmatpush.msra.mxu0 0.0
    %519 = vmatpush.msra.mxu0 0.0
    %520 = vmatpush.msra.mxu0 0.0
    %521 = vmatpush.msra.mxu0 0.0
    %522 = vmatpush.msra.mxu0 0.0
    %523 = vmatpush.msra.mxu0 0.0
    %524 = vmatpush.msra.mxu0 0.0
    %525 = vmatpush.msra.mxu0 0.0
    %526 = vmatpush.msra.mxu0 0.0
    %527 = vmatpush.msra.mxu0 0.0
    %528 = vmatpush.msra.mxu0 0.0
    %529 = vmatpush.msra.mxu0 0.0
    %530 = vmatpush.msra.mxu0 %v510
    %531 = vmatpush.msra.mxu0 %v509
    %532 = vmatpush.msra.mxu0 %v508
    %533 = vmatpush.msra.mxu0 %v507
    %534 = vmatmul.f32.gmra.mxu0 %v516
    %v535 = vpop.f32.mrf.mxu0
    %v536 = vadd.f32 %v513, %v535
    %537 = vdwg.mxu0
    %vm538 = vcmask 123904
    %539 = vst.msk [vmem:[#allocation8] sm:$0x3] %vm538, %v536
    // Predicated region
    $region58: #{tpu_custom_call.1} parent=1 // pred_check
      _
    $region59: #{tpu_custom_call.1} parent=1 // pred_check_branch
      %541 = sbr.rel (0) target = $region61
    $region60: #{tpu_custom_call.1} parent=1 // pred_region
      %543 = vsyncadd [#allocation4], 0
      %s545 = sshll.u32 [#allocation8], 4
      %s546 = int_to_ptr.vmem [resolvable:$true] %s545
      %s547 = sshll.u32 %s11, 4
      %s548 = int_to_ptr.hbm [resolvable:$true] %s547
      %550 = dma.vmem_to_hbm [thread:$0]  %s546, 32, %s548, [#allocation4]
    $region61: #{tpu_custom_call.1} parent=1 // pred_fallthru
      _
    // Predicated region
    $region62: #{tpu_custom_call.1} parent=1 // pred_check
      _
    $region63: #{tpu_custom_call.1} parent=1 // pred_check_branch
      %552 = sbr.rel (0) target = $region65
    $region64: #{tpu_custom_call.1} parent=1 // pred_region
      %554 = dma.done [#allocation4], 32
    $region65: #{tpu_custom_call.1} parent=1 // pred_fallthru
      _
    %555 = vsyncpa [#allocation3], 1
    %556 = vsyncpa [#allocation6], 1
    %557 = vsyncpa [#allocation4], 1

</llo_original>
